<compile_context>
chip_gen: v7x
topology: tpu7x:2x2x1
jax: 0.10.0
libtpu: 0.0.40
codegen_flags: <defaults>
</compile_context>

<pallas_src>
import jax
import jax.numpy as jnp
from jax.experimental import pallas as pl
from jax.experimental.pallas import tpu as pltpu


_EPS = 1e-5


# --------------------------------------------------------------------------- #
# Hardware-aware sizing helpers
# --------------------------------------------------------------------------- #
def _vmem_capacity_bytes():
    """Physical VMEM of the local TPU; conservative fallback if unavailable."""
    try:
        return int(pltpu.get_tpu_info().vmem_capacity_bytes)
    except Exception:
        return 64 << 20  # v7x-sized fallback: safe on every generation


def _target_tile_bytes(itemsize):
    """Largest x-tile (in input bytes) s.t. 2x(in+out) double buffers plus ~3
    f32-sized intermediates fit in ~80% of physical VMEM."""
    cap = _vmem_capacity_bytes()
    usable = int(cap * 0.80)
    f32_mult = max(1, 4 // max(1, itemsize))          # f32 upcast blow-up
    denom = 4 + 3 * f32_mult                          # 4x tile + 3x f32 temps
    return max(1 << 20, usable // denom), cap


def _vmem_limit(tile_elems, itemsize, cap):
    needed = 4 * tile_elems * itemsize + 3 * tile_elems * 4 + (2 << 20)
    return int(min(max(needed, 16 << 20), cap - (8 << 20)))


# --------------------------------------------------------------------------- #
# Path A: channels-last (..., C) — matches the module contract
# --------------------------------------------------------------------------- #
def _ln_rows_kernel(x_ref, w_ref, o_ref):
    # x_ref: (TR, C), w_ref: (1, C) f32, o_ref: (TR, C)
    x = x_ref[...].astype(jnp.float32)
    inv_c = jnp.float32(1.0 / x.shape[-1])
    mu = jnp.sum(x, axis=-1, keepdims=True) * inv_c
    xc = x - mu
    var = jnp.sum(xc * xc, axis=-1, keepdims=True) * inv_c   # >= 0 always
    inv = jax.lax.rsqrt(var + jnp.float32(_EPS))
    o_ref[...] = (x * inv * w_ref[...]).astype(o_ref.dtype)


def _pick_tile_rows(n_rows, n_cols, itemsize, target_tile_bytes):
    rows = target_tile_bytes // max(1, n_cols * itemsize)
    rows = max(8, (int(rows) // 8) * 8)
    if rows >= n_rows:
        # A single full-extent block pins all work on one TensorCore (v7x
        # megacore); split into >=2 grid steps when there is room to do so.
        if n_rows > 16:
            half = -(-n_rows // 2)
            rows = max(8, ((half + 7) // 8) * 8)
        else:
            rows = n_rows
    return min(rows, n_rows)


def biasfree_layernorm(x, weight, *, tile_rows=None):
    """x: (..., C), weight: (C,). Returns same shape/dtype as x."""
    orig_shape = x.shape
    C = orig_shape[-1]
    assert weight.shape == (C,)

    x2 = x.reshape(-1, C)                              # (N, C)
    N = x2.shape[0]
    itemsize = jnp.dtype(x.dtype).itemsize

    target, cap = _target_tile_bytes(itemsize)
    tr = tile_rows if tile_rows is not None else _pick_tile_rows(
        N, C, itemsize, target)
    tr = min(tr, N)
    grid = (pl.cdiv(N, tr),)                           # ragged tail is masked

    w2 = weight.astype(jnp.float32).reshape(1, C)
    vmem_limit = _vmem_limit(tr * C, itemsize, cap)

    cost = pl.CostEstimate(
        flops=7 * N * C,
        transcendentals=N,
        bytes_accessed=2 * N * C * itemsize + C * 4,
    )

    out = pl.pallas_call(
        _ln_rows_kernel,
        out_shape=jax.ShapeDtypeStruct((N, C), x.dtype),
        grid_spec=pltpu.PrefetchScalarGridSpec(
            num_scalar_prefetch=0,
            grid=grid,
            in_specs=[
                pl.BlockSpec((tr, C), lambda i: (i, 0)),   # x row tile
                pl.BlockSpec((1, C), lambda i: (0, 0)),    # resident weight
            ],
            out_specs=pl.BlockSpec((tr, C), lambda i: (i, 0)),
        ),
        compiler_params=pltpu.CompilerParams(
            dimension_semantics=("parallel",),
            vmem_limit_bytes=vmem_limit,
        ),
        cost_estimate=cost,
    )(x2, w2)

    return out.reshape(orig_shape)


# --------------------------------------------------------------------------- #
# Path B: channels-first NCHW — lane-dense layout for C < 128 (Restormer)
# --------------------------------------------------------------------------- #
def _ln_nchw_kernel(x_ref, w_ref, o_ref):
    # x_ref: (1, C, T) with tokens on lanes; w_ref: (1, C, 1) f32
    x = x_ref[...].astype(jnp.float32)
    inv_c = jnp.float32(1.0 / x.shape[1])
    mu = jnp.sum(x, axis=1, keepdims=True) * inv_c           # sublane reduce
    xc = x - mu
    var = jnp.sum(xc * xc, axis=1, keepdims=True) * inv_c
    inv = jax.lax.rsqrt(var + jnp.float32(_EPS))
    o_ref[...] = (x * inv * w_ref[...]).astype(o_ref.dtype)


def biasfree_layernorm_nchw(x, weight, *, tile_hw=None):
    """x: (B, C, H, W), normalization over C. Lane-dense for small C."""
    B, C, H, W = x.shape
    assert weight.shape == (C,)
    if C % 8 != 0:
        # Sublane constraint not met; fall back to the channels-last path.
        xl = jnp.moveaxis(x, 1, -1)
        return jnp.moveaxis(biasfree_layernorm(xl, weight), -1, 1)

    HW = H * W
    x3 = x.reshape(B, C, HW)
    itemsize = jnp.dtype(x.dtype).itemsize
    target, cap = _target_tile_bytes(itemsize)

    if tile_hw is None:
        t = target // max(1, C * itemsize)
        t = max(128, (int(t) // 128) * 128)
        if t >= HW and B == 1 and HW > 256:
            # keep >=2 grid steps for v7x megacore
            t = max(128, ((-(-HW // 2) + 127) // 128) * 128)
        tile_hw = t
    thw = min(tile_hw, HW)
    grid = (B, pl.cdiv(HW, thw))                       # ragged HW tail masked

    w3 = weight.astype(jnp.float32).reshape(1, C, 1)
    vmem_limit = _vmem_limit(C * thw, itemsize, cap)

    cost = pl.CostEstimate(
        flops=7 * B * C * HW,
        transcendentals=B * HW,
        bytes_accessed=2 * B * C * HW * itemsize + C * 4,
    )

    out = pl.pallas_call(
        _ln_nchw_kernel,
        out_shape=jax.ShapeDtypeStruct((B, C, HW), x.dtype),
        grid_spec=pltpu.PrefetchScalarGridSpec(
            num_scalar_prefetch=0,
            grid=grid,
            in_specs=[
                pl.BlockSpec((1, C, thw), lambda b, j: (b, 0, j)),
                pl.BlockSpec((1, C, 1), lambda b, j: (0, 0, 0)),
            ],
            out_specs=pl.BlockSpec((1, C, thw), lambda b, j: (b, 0, j)),
        ),
        compiler_params=pltpu.CompilerParams(
            dimension_semantics=("parallel", "parallel"),
            vmem_limit_bytes=vmem_limit,
        ),
        cost_estimate=cost,
    )(x3, w3)

    return out.reshape(B, C, H, W)


# --------------------------------------------------------------------------- #
# Pure-JAX reference mirroring the PyTorch forward
# --------------------------------------------------------------------------- #
def biasfree_layernorm_ref(x, weight):
    x32 = x.astype(jnp.float32)
    sigma = jnp.var(x32, axis=-1, keepdims=True)       # unbiased=False
    return (x32 / jnp.sqrt(sigma + 1e-5) * weight).astype(x.dtype)


if __name__ == "__main__":
    key = jax.random.PRNGKey(0)
    kx, kw, kn = jax.random.split(key, 3)

    # --- channels-last path (module contract) ------------------------------
    # tokens N = 2*67 = 134 -> exercises multiple grid steps + ragged tail.
    B, HW, C = 2, 67, 32
    x = jax.random.normal(kx, (B, HW, C), dtype=jnp.float32) + 3.0   # DC offset
    weight = 1.0 + 0.1 * jax.random.normal(kw, (C,), dtype=jnp.float32)

    y_ref = biasfree_layernorm_ref(x, weight)
    y1 = jax.block_until_ready(biasfree_layernorm(x, weight, tile_rows=64))
    y2 = jax.block_until_ready(biasfree_layernorm(x, weight))

    assert y1.shape == x.shape and y1.dtype == x.dtype
    assert y2.shape == x.shape and y2.dtype == x.dtype
    assert jnp.allclose(y1, y_ref, atol=1e-5, rtol=1e-5), "mismatch (tiled path)"
    assert jnp.allclose(y2, y_ref, atol=1e-5, rtol=1e-5), "mismatch (auto path)"

    # --- lane-dense NCHW path (Restormer usage, C < 128) -------------------
    Bn, Cn, Hn, Wn = 2, 32, 16, 16
    xn = jax.random.normal(kn, (Bn, Cn, Hn, Wn), dtype=jnp.float32) + 1.5
    yn_ref = jnp.moveaxis(
        biasfree_layernorm_ref(jnp.moveaxis(xn, 1, -1), weight), -1, 1)

    yn1 = jax.block_until_ready(biasfree_layernorm_nchw(xn, weight))
    yn2 = jax.block_until_ready(biasfree_layernorm_nchw(xn, weight, tile_hw=128))

    assert yn1.shape == xn.shape and yn1.dtype == xn.dtype
    assert jnp.allclose(yn1, yn_ref, atol=1e-5, rtol=1e-5), "mismatch (nchw auto)"
    assert jnp.allclose(yn2, yn_ref, atol=1e-5, rtol=1e-5), "mismatch (nchw tiled)"

    print("KERNEL_OK")
</pallas_src>

<mosaic_0001>
module attributes {stable_mosaic.version = 11 : i64} {
  func.func @_ln_rows_kernel(%arg0: i32, %arg1: memref<64x32xf32, #tpu.memory_space<vmem>>, %arg2: memref<1x32xf32, #tpu.memory_space<vmem>>, %arg3: memref<64x32xf32, #tpu.memory_space<vmem>>) attributes {dimension_semantics = [#tpu.dimension_semantics<parallel>], iteration_bounds = array<i64: 3>, scalar_prefetch = 0 : i64, scratch_operands = 0 : i64, tpu.core_type = #tpu.core_type<tc>, window_params = [{transform_indices = @transform_0, window_bounds = array<i64: 64, 32>}, {pipeline_mode = #tpu.pipeline_mode<synchronous>, transform_indices = @transform_1, window_bounds = array<i64: 1, 32>}, {transform_indices = @transform_2, window_bounds = array<i64: 64, 32>}]} {
    %c0 = arith.constant 0 : index
    %c0_0 = arith.constant 0 : index
    %0 = vector.load %arg1[%c0, %c0_0] : memref<64x32xf32, #tpu.memory_space<vmem>>, vector<64x32xf32>
    %cst = arith.constant dense<0.000000e+00> : vector<64xf32>
    %1 = vector.multi_reduction <add>, %0, %cst [1] : vector<64x32xf32> to vector<64xf32>
    %2 = vector.shape_cast %1 : vector<64xf32> to vector<64x1xf32>
    %cst_1 = arith.constant 3.125000e-02 : f32
    %3 = vector.broadcast %cst_1 : f32 to vector<64x1xf32>
    %4 = arith.mulf %2, %3 : vector<64x1xf32>
    %5 = vector.broadcast %4 : vector<64x1xf32> to vector<64x32xf32>
    %6 = arith.subf %0, %5 : vector<64x32xf32>
    %7 = arith.mulf %6, %6 : vector<64x32xf32>
    %cst_2 = arith.constant dense<0.000000e+00> : vector<64xf32>
    %8 = vector.multi_reduction <add>, %7, %cst_2 [1] : vector<64x32xf32> to vector<64xf32>
    %9 = vector.shape_cast %8 : vector<64xf32> to vector<64x1xf32>
    %cst_3 = arith.constant 3.125000e-02 : f32
    %10 = vector.broadcast %cst_3 : f32 to vector<64x1xf32>
    %11 = arith.mulf %9, %10 : vector<64x1xf32>
    %cst_4 = arith.constant 9.99999974E-6 : f32
    %12 = vector.broadcast %cst_4 : f32 to vector<64x1xf32>
    %13 = arith.addf %11, %12 : vector<64x1xf32>
    %14 = math.rsqrt %13 : vector<64x1xf32>
    %15 = vector.broadcast %14 : vector<64x1xf32> to vector<64x32xf32>
    %16 = arith.mulf %0, %15 : vector<64x32xf32>
    %c0_5 = arith.constant 0 : index
    %c0_6 = arith.constant 0 : index
    %17 = vector.load %arg2[%c0_5, %c0_6] : memref<1x32xf32, #tpu.memory_space<vmem>>, vector<1x32xf32>
    %18 = vector.broadcast %17 : vector<1x32xf32> to vector<64x32xf32>
    %19 = arith.mulf %16, %18 : vector<64x32xf32>
    %c0_7 = arith.constant 0 : index
    %c0_8 = arith.constant 0 : index
    %20 = vector.load %arg3[%c0_7, %c0_8] : memref<64x32xf32, #tpu.memory_space<vmem>>, vector<64x32xf32>
    tpu.vector_store %arg3[%c0_7, %c0_8], %19 {strides = array<i32>} : memref<64x32xf32, #tpu.memory_space<vmem>>, vector<64x32xf32>,
    return
  }
  func.func @transform_0(%arg0: i32) -> (i32, i32) {
    %c0_i32 = arith.constant 0 : i32
    %c0_i32_0 = arith.constant 0 : i32
    return %arg0, %c0_i32 : i32, i32
  }
  func.func @transform_1(%arg0: i32) -> (i32, i32) {
    %c0_i32 = arith.constant 0 : i32
    %c0_i32_0 = arith.constant 0 : i32
    %c0_i32_1 = arith.constant 0 : i32
    return %c0_i32, %c0_i32_0 : i32, i32
  }
  func.func @transform_2(%arg0: i32) -> (i32, i32) {
    %c0_i32 = arith.constant 0 : i32
    %c0_i32_0 = arith.constant 0 : i32
    return %arg0, %c0_i32 : i32, i32
  }
}

</mosaic_0001>

<llo_original>
// kernel: tpu_custom_call.1
$region0: #{tpu_custom_call.1}
  #allocation0 [shape = 'u32[]', space=smem, size = 0x4, offset = 0x4, fixed_abs, tag = 'smem constant byte address 0x4 - core index']
  #allocation1 [shape = 'u32[144,128]{1,0:T(1,128)}', space=vmem, size = 0x12000, scoped, tag = 'internal scratch']
  %s0 = inlined_call_operand.vmem [shape: f32[134,32], index: 0, kind: input, shape index: {}]
  %s1 = inlined_call_operand.vmem [shape: f32[1,32], index: 1, kind: input, shape index: {}]
  %s2 = inlined_call_operand.vmem [shape: f32[134,32], index: 2, kind: output, shape index: {}]
  %s3 = sld [smem:[#allocation0]]
  $region89: #{tpu_custom_call.1} parent=0
    _
  %s5 = ssub.s32 1, %s3
  %s6 = scalar_select 0, %s5, %s3
  $region1: #{tpu_custom_call.1} parent=0
    #allocation2 [shape = 'u8[65536]{0}', space=vmem, size = 0x10000, scoped, tag = 'output window, operand 0']
    loop: start=0, step=1, limit=5
    $region2: #{tpu_custom_call.1} parent=1 // loop_pre_header
      _
    $region3: #{tpu_custom_call.1} parent=1 // loop_header
      %s8 = sphi 0, %s12
      %p9 = scmp.ge.s32.totalorder %s8, 5
      %s18 = sphi 0, %s20
      %s21 = sphi 0, %s18
      %s22 = sphi 0, %s21
      %s38 = sphi 0, %s22
      %s42 = sphi 0, %s42
      %s44 = sphi 0, %s42
      %s45 = sphi 0, %s44
      %s59 = sphi 0, %s45
      %s65 = sphi 0, %s67
      %s68 = sphi 0, %s65
      %s69 = sphi 0, %s68
      %s85 = sphi 0, %s69
    $region4: #{tpu_custom_call.1} parent=1 // loop_header_branch
      %11 = sbr.rel (%p9) target = $region8
    $region5: #{tpu_custom_call.1} parent=1 // loop_body
      %s13 = ssub.s32 %s8, 1
      %s14 = ssub.s32 %s8, 2
      %s15 = sadd.s32 %s8, 1
      %s16 = ssub.s32 %s8, %s15
      %p17 = scmp.eq.s32.totalorder %s16, 0
      %s19 = sadd.s32 %s18, 1
      %s20 = scalar_select %p17, %s18, %s19
      %p23 = pneg %p17
      %p24 = scmp.eq.s32.totalorder %s8, 2
      %p25 = por %p23, %p24
      %p26 = scmp.ne.s32.totalorder %s18, %s21
      %p27 = scmp.eq.s32.totalorder %s8, 0
      %p28 = por %p26, %p27
      %p29 = scmp.ne.s32.totalorder %s18, %s21
      %p30 = scmp.eq.s32.totalorder %s13, 2
      %p31 = por %p29, %p30
      %p32 = scmp.ne.s32.totalorder %s21, %s22
      %p33 = scmp.eq.s32.totalorder %s13, 0
      %p34 = por %p32, %p33
      %p35 = scmp.ne.s32.totalorder %s21, %s22
      %p36 = scmp.eq.s32.totalorder %s14, 2
      %p37 = por %p35, %p36
      %p39 = scmp.ne.s32.totalorder %s22, %s38
      %p40 = scmp.eq.s32.totalorder %s14, 0
      %p41 = por %p39, %p40
      %s43 = sadd.s32 %s42, 1
      %p46 = scmp.eq.s32.totalorder %s8, 2
      %p47 = scmp.ne.s32.totalorder %s42, %s44
      %p48 = scmp.eq.s32.totalorder %s8, 0
      %p49 = por %p47, %p48
      %p50 = scmp.ne.s32.totalorder %s42, %s44
      %p51 = scmp.eq.s32.totalorder %s13, 2
      %p52 = por %p50, %p51
      %p53 = scmp.ne.s32.totalorder %s44, %s45
      %p54 = scmp.eq.s32.totalorder %s13, 0
      %p55 = por %p53, %p54
      %p56 = scmp.ne.s32.totalorder %s44, %s45
      %p57 = scmp.eq.s32.totalorder %s14, 2
      %p58 = por %p56, %p57
      %p60 = scmp.ne.s32.totalorder %s45, %s59
      %p61 = scmp.eq.s32.totalorder %s14, 0
      %p62 = por %p60, %p61
      %s63 = ssub.s32 %s8, %s15
      %p64 = scmp.eq.s32.totalorder %s63, 0
      %s66 = sadd.s32 %s65, 1
      %s67 = scalar_select %p64, %s65, %s66
      %p70 = pneg %p64
      %p71 = scmp.eq.s32.totalorder %s8, 2
      %p72 = por %p70, %p71
      %p73 = scmp.ne.s32.totalorder %s65, %s68
      %p74 = scmp.eq.s32.totalorder %s8, 0
      %p75 = por %p73, %p74
      %p76 = scmp.ne.s32.totalorder %s65, %s68
      %p77 = scmp.eq.s32.totalorder %s13, 2
      %p78 = por %p76, %p77
      %p79 = scmp.ne.s32.totalorder %s68, %s69
      %p80 = scmp.eq.s32.totalorder %s13, 0
      %p81 = por %p79, %p80
      %p82 = scmp.ne.s32.totalorder %s68, %s69
      %p83 = scmp.eq.s32.totalorder %s14, 2
      %p84 = por %p82, %p83
      %p86 = scmp.ne.s32.totalorder %s69, %s85
      %p87 = scmp.eq.s32.totalorder %s14, 0
      %p88 = por %p86, %p87
      %p89 = scmp.le.s32.totalorder 1, %s8
      %p90 = scmp.lt.s32.totalorder %s8, 4
      %p91 = pnand %p89, %p90
      %p92 = pneg %p91
      // Predicated region
      $region9: #{tpu_custom_call.1} parent=5 // pred_check
        _
      $region10: #{tpu_custom_call.1} parent=5 // pred_check_branch
        %94 = sbr.rel (%p91) target = $region12
      $region11: #{tpu_custom_call.1} parent=5 // pred_region
        %s95 = ssub.s32 %s8, 1
        // Predicated region
        $region13: #{tpu_custom_call.1} parent=11 // pred_check
          %p96 = pneg %p55
        $region14: #{tpu_custom_call.1} parent=11 // pred_check_branch
          %98 = sbr.rel (%p96) target = $region16
        $region15: #{tpu_custom_call.1} parent=11 // pred_region
          _
        $region16: #{tpu_custom_call.1} parent=11 // pred_fallthru
          _
      $region12: #{tpu_custom_call.1} parent=5 // pred_fallthru
        _
      %p99 = scmp.lt.s32.totalorder %s8, 3
      // Predicated region
      $region17: #{tpu_custom_call.1} parent=5 // pred_check
        %p100 = pneg %p99
      $region18: #{tpu_custom_call.1} parent=5 // pred_check_branch
        %102 = sbr.rel (%p100) target = $region20
      $region19: #{tpu_custom_call.1} parent=5 // pred_region
        // Predicated region
        $region21: #{tpu_custom_call.1} parent=19 // pred_check
          %p103 = pneg %p28
        $region22: #{tpu_custom_call.1} parent=19 // pred_check_branch
          %105 = sbr.rel (%p103) target = $region24
        $region23: #{tpu_custom_call.1} parent=19 // pred_region
          %s106 = smul.u32 8, %s8
          %s107 = ssub.s32 17, %s106
          %p108 = scmp.lt.s32.totalorder %s107, 8
          %s109 = scalar_select %p108, %s107, 8
          %s110 = smul.u32 128, %s109
          %p111 = scmp.lt.s32.totalorder %s106, 16
          %s112 = scalar_select %p111, %s106, 16
          %s113 = smul.addr %s112, 8
          %s114 = scalar_lea.vmem %s0, %s113
          %s115 = smul.u32 8, %s8
          %s116 = ssub.s32 17, %s115
          %p117 = scmp.lt.s32.totalorder %s116, 8
          %s118 = scalar_select %p117, %s116, 8
          %s119 = smul.u32 128, %s118
        $region24: #{tpu_custom_call.1} parent=19 // pred_fallthru
          _
      $region20: #{tpu_custom_call.1} parent=5 // pred_fallthru
        _
      %p120 = scmp.le.s32.totalorder 1, %s8
      %p121 = scmp.lt.s32.totalorder %s8, 4
      %p122 = pnand %p120, %p121
      %p123 = pneg %p122
      // Predicated region
      $region25: #{tpu_custom_call.1} parent=5 // pred_check
        _
      $region26: #{tpu_custom_call.1} parent=5 // pred_check_branch
        %125 = sbr.rel (%p122) target = $region28
      $region27: #{tpu_custom_call.1} parent=5 // pred_region
        %s126 = ssub.s32 %s8, 1
        %s127 = smul.u32 8, %s13
        %s128 = ssub.s32 17, %s127
        %p129 = scmp.lt.s32.totalorder %s128, 8
        %s130 = scalar_select %p129, %s128, 8
        %s131 = smul.u32 128, %s130
        %p132 = scmp.lt.s32.totalorder %s127, 16
        %s133 = scalar_select %p132, %s127, 16
        %s134 = smul.addr %s133, 8
        %s135 = scalar_lea.vmem %s0, %s134
        %p136 = pneg %p34
        %p137 = pneg %p31
        %p138 = pneg %p55
        %p139 = pneg %p52
        %p140 = pneg %p81
        %p141 = pneg %p78
        %s142 = sand.u32 %s68, 1
        %s143 = sand.u32 %s68, 1
        %s144 = smul.addr %s143, 64
        %s145 = scalar_lea.vmem [#allocation2], %s144
        %s146 = smul.u32 8, %s13
        %s147 = ssub.s32 17, %s146
        %p148 = scmp.lt.s32.totalorder %s147, 8
        %s149 = scalar_select %p148, %s147, 8
        %s150 = smul.u32 128, %s149
        %p151 = scmp.lt.s32.totalorder %s146, 16
        %s152 = scalar_select %p151, %s146, 16
        %s153 = smul.addr %s152, 8
        %s154 = scalar_lea.vmem %s0, %s153
        %s155 = smul.u32 8, %s13
        %s156 = ssub.s32 17, %s155
        %p157 = scmp.lt.s32.totalorder %s156, 8
        %s158 = scalar_select %p157, %s156, 8
        %s159 = smul.u32 128, %s158
        %s160 = smul.u32 8, %s13
        %s161 = ssub.s32 17, %s160
        %p162 = scmp.lt.s32.totalorder %s161, 8
        %s163 = scalar_select %p162, %s161, 8
        %s164 = smul.u32 128, %s163
        %v165 = vld [vmem:[%s154] sm:$0xff]
        %v166 = vld [vmem:[%s154 + $0x8] sm:$0xff]
        %v167 = vld [vmem:[%s154 + $0x10] sm:$0xff]
        %v168 = vld [vmem:[%s154 + $0x18] sm:$0xff]
        %v169 = vld [vmem:[%s154 + $0x20] sm:$0xff]
        %v170 = vld [vmem:[%s154 + $0x28] sm:$0xff]
        %v171 = vld [vmem:[%s154 + $0x30] sm:$0xff]
        %v172 = vld [vmem:[%s154 + $0x38] sm:$0xff]
        %vm173 = vcmask 261120
        %v174 = vsel %vm173, %v165, 0.0
        %175 = vadd.xlane.f32.xlu0 %v174
        %v176 = vpop.xlane.xlu0 %175
        %v177 = vsel %vm173, %v166, 0.0
        %178 = vadd.xlane.f32.xlu0 %v177
        %v179 = vpop.xlane.xlu0 %178
        %v180 = vsel %vm173, %v167, 0.0
        %181 = vadd.xlane.f32.xlu0 %v180
        %v182 = vpop.xlane.xlu0 %181
        %v183 = vsel %vm173, %v168, 0.0
        %184 = vadd.xlane.f32.xlu0 %v183
        %v185 = vpop.xlane.xlu0 %184
        %v186 = vsel %vm173, %v169, 0.0
        %187 = vadd.xlane.f32.xlu0 %v186
        %v188 = vpop.xlane.xlu0 %187
        %v189 = vsel %vm173, %v170, 0.0
        %190 = vadd.xlane.f32.xlu0 %v189
        %v191 = vpop.xlane.xlu0 %190
        %v192 = vsel %vm173, %v171, 0.0
        %193 = vadd.xlane.f32.xlu0 %v192
        %v194 = vpop.xlane.xlu0 %193
        %v195 = vsel %vm173, %v172, 0.0
        %196 = vadd.xlane.f32.xlu0 %v195
        %v197 = vpop.xlane.xlu0 %196
        %v198 = vmul.f32 %v176, 0.03125
        %v199 = vmul.f32 %v179, 0.03125
        %v200 = vmul.f32 %v182, 0.03125
        %v201 = vmul.f32 %v185, 0.03125
        %v202 = vmul.f32 %v188, 0.03125
        %v203 = vmul.f32 %v191, 0.03125
        %v204 = vmul.f32 %v194, 0.03125
        %v205 = vmul.f32 %v197, 0.03125
        %v206 = vsub.f32 %v165, %v198
        %v207 = vsub.f32 %v166, %v199
        %v208 = vsub.f32 %v167, %v200
        %v209 = vsub.f32 %v168, %v201
        %v210 = vsub.f32 %v169, %v202
        %v211 = vsub.f32 %v170, %v203
        %v212 = vsub.f32 %v171, %v204
        %v213 = vsub.f32 %v172, %v205
        %v214 = vmul.f32 %v206, %v206
        %v215 = vmul.f32 %v207, %v207
        %v216 = vmul.f32 %v208, %v208
        %v217 = vmul.f32 %v209, %v209
        %v218 = vmul.f32 %v210, %v210
        %v219 = vmul.f32 %v211, %v211
        %v220 = vmul.f32 %v212, %v212
        %v221 = vmul.f32 %v213, %v213
        %v222 = vsel %vm173, %v214, 0.0
        %223 = vadd.xlane.f32.xlu0 %v222
        %v224 = vpop.xlane.xlu0 %223
        %v225 = vsel %vm173, %v215, 0.0
        %226 = vadd.xlane.f32.xlu0 %v225
        %v227 = vpop.xlane.xlu0 %226
        %v228 = vsel %vm173, %v216, 0.0
        %229 = vadd.xlane.f32.xlu0 %v228
        %v230 = vpop.xlane.xlu0 %229
        %v231 = vsel %vm173, %v217, 0.0
        %232 = vadd.xlane.f32.xlu0 %v231
        %v233 = vpop.xlane.xlu0 %232
        %v234 = vsel %vm173, %v218, 0.0
        %235 = vadd.xlane.f32.xlu0 %v234
        %v236 = vpop.xlane.xlu0 %235
        %v237 = vsel %vm173, %v219, 0.0
        %238 = vadd.xlane.f32.xlu0 %v237
        %v239 = vpop.xlane.xlu0 %238
        %v240 = vsel %vm173, %v220, 0.0
        %241 = vadd.xlane.f32.xlu0 %v240
        %v242 = vpop.xlane.xlu0 %241
        %v243 = vsel %vm173, %v221, 0.0
        %244 = vadd.xlane.f32.xlu0 %v243
        %v245 = vpop.xlane.xlu0 %244
        %v246 = vmul.f32 %v224, 0.03125
        %v247 = vmul.f32 %v227, 0.03125
        %v248 = vmul.f32 %v230, 0.03125
        %v249 = vmul.f32 %v233, 0.03125
        %v250 = vmul.f32 %v236, 0.03125
        %v251 = vmul.f32 %v239, 0.03125
        %v252 = vmul.f32 %v242, 0.03125
        %v253 = vmul.f32 %v245, 0.03125
        %v254 = vadd.f32 %v246, 1e-05
        %v255 = vadd.f32 %v247, 1e-05
        %v256 = vadd.f32 %v248, 1e-05
        %v257 = vadd.f32 %v249, 1e-05
        %v258 = vadd.f32 %v250, 1e-05
        %v259 = vadd.f32 %v251, 1e-05
        %v260 = vadd.f32 %v252, 1e-05
        %v261 = vadd.f32 %v253, 1e-05
        %v262 = vrsqrt.pop %v254
        %v263 = vrsqrt.pop %v255
        %v264 = vrsqrt.pop %v256
        %v265 = vrsqrt.pop %v257
        %v266 = vrsqrt.pop %v258
        %v267 = vrsqrt.pop %v259
        %v268 = vrsqrt.pop %v260
        %v269 = vrsqrt.pop %v261
        %v270 = vmul.f32 %v165, %v262
        %v271 = vmul.f32 %v166, %v263
        %v272 = vmul.f32 %v167, %v264
        %v273 = vmul.f32 %v168, %v265
        %v274 = vmul.f32 %v169, %v266
        %v275 = vmul.f32 %v170, %v267
        %v276 = vmul.f32 %v171, %v268
        %v277 = vmul.f32 %v172, %v269
        %v278 = vld [vmem:[%s1] sm:$0x1]
        %v280 = vlaneseq
        %v281 = vshrl.u32 %v280, 7
        %v282 = vsub.s32 0, %v281
        %v283 = vrot.slane %v278, %v282
        %v285 = vmul.f32 %v270, %v283
        %v286 = vmul.f32 %v271, %v283
        %v287 = vmul.f32 %v272, %v283
        %v288 = vmul.f32 %v273, %v283
        %v289 = vmul.f32 %v274, %v283
        %v290 = vmul.f32 %v275, %v283
        %v291 = vmul.f32 %v276, %v283
        %v292 = vmul.f32 %v277, %v283
        %293 = vst.msk [vmem:[%s145] sm:$0xff] %vm173, %v285
        %294 = vst.msk [vmem:[%s145 + $0x8] sm:$0xff] %vm173, %v286
        %295 = vst.msk [vmem:[%s145 + $0x10] sm:$0xff] %vm173, %v287
        %296 = vst.msk [vmem:[%s145 + $0x18] sm:$0xff] %vm173, %v288
        %297 = vst.msk [vmem:[%s145 + $0x20] sm:$0xff] %vm173, %v289
        %298 = vst.msk [vmem:[%s145 + $0x28] sm:$0xff] %vm173, %v290
        %299 = vst.msk [vmem:[%s145 + $0x30] sm:$0xff] %vm173, %v291
        %300 = vst.msk [vmem:[%s145 + $0x38] sm:$0xff] %vm173, %v292
        %s301 = sand.u32 %s68, 1
        %s302 = sand.u32 %s68, 1
        %s303 = smul.addr %s302, 64
        %s304 = scalar_lea.vmem [#allocation2], %s303
        // Predicated region
        $region29: #{tpu_custom_call.1} parent=27 // pred_check
          %p305 = pneg %p78
        $region30: #{tpu_custom_call.1} parent=27 // pred_check_branch
          %307 = sbr.rel (%p305) target = $region32
        $region31: #{tpu_custom_call.1} parent=27 // pred_region
          %s308 = smul.u32 8, %s13
          %s309 = ssub.s32 17, %s308
          %p310 = scmp.lt.s32.totalorder %s309, 8
          %s311 = scalar_select %p310, %s309, 8
          %s312 = smul.u32 128, %s311
          %p313 = scmp.ne.s32.totalorder 0, %s312
          %s314 = smul.addr %s308, 8
          %s315 = scalar_lea.vmem %s2, %s314
          // Predicated region
          $region33: #{tpu_custom_call.1} parent=31 // pred_check
            %p316 = pneg %p313
          $region34: #{tpu_custom_call.1} parent=31 // pred_check_branch
            %318 = sbr.rel (%p316) target = $region36
          $region35: #{tpu_custom_call.1} parent=31 // pred_region
            // Predicated region
            $region37: #{tpu_custom_call.1} parent=35 // pred_check
              _
            $region38: #{tpu_custom_call.1} parent=35 // pred_check_branch
              %320 = sbr.rel (0) target = $region40
            $region39: #{tpu_custom_call.1} parent=35 // pred_region
              // Predicated region
              $region59: #{tpu_custom_call.1} parent=39 // pred_check
                _
              $region60: #{tpu_custom_call.1} parent=39 // pred_check_branch
                %383 = sbr.rel (0) target = $region62
              $region61: #{tpu_custom_call.1} parent=39 // pred_region
                %s384 = sshrl.u32 %s311, 3
                // While loop
                $region63: #{tpu_custom_call.1} parent=61 // loop_pre_header
                  _
                $region64: #{tpu_custom_call.1} parent=61 // loop_header
                  %s386 = sphi 0, %s388
                  %p387 = scmp.ge.s32.totalorder %s386, %s384
                  %s391 = sphi 0, %s412
                  %s392 = sphi %s304, %s415
                  %s393 = sphi %s315, %s416
                $region65: #{tpu_custom_call.1} parent=61 // loop_header_branch
                  %390 = sbr.rel (%p387) target = $region69
                $region66: #{tpu_custom_call.1} parent=61 // loop_body
                  %v394 = vld [vmem:[%s392] sm:$0xff]
                  %395 = vst [vmem:[%s393] sm:$0xff] %v394
                  %v396 = vld [vmem:[%s392 + $0x8] sm:$0xff]
                  %397 = vst [vmem:[%s393 + $0x8] sm:$0xff] %v396
                  %v398 = vld [vmem:[%s392 + $0x10] sm:$0xff]
                  %399 = vst [vmem:[%s393 + $0x10] sm:$0xff] %v398
                  %v400 = vld [vmem:[%s392 + $0x18] sm:$0xff]
                  %401 = vst [vmem:[%s393 + $0x18] sm:$0xff] %v400
                  %v402 = vld [vmem:[%s392 + $0x20] sm:$0xff]
                  %403 = vst [vmem:[%s393 + $0x20] sm:$0xff] %v402
                  %v404 = vld [vmem:[%s392 + $0x28] sm:$0xff]
                  %405 = vst [vmem:[%s393 + $0x28] sm:$0xff] %v404
                  %v406 = vld [vmem:[%s392 + $0x30] sm:$0xff]
                  %407 = vst [vmem:[%s393 + $0x30] sm:$0xff] %v406
                  %v408 = vld [vmem:[%s392 + $0x38] sm:$0xff]
                  %409 = vst [vmem:[%s393 + $0x38] sm:$0xff] %v408
                  %s410 = sadd.s32 1, %s391
                  %p411 = scmp.ge.s32.totalorder %s410, %s384
                  %s412 = scalar_select %p411, 0, %s410
                  %s413 = smul.u32 %s412, 64
                  %s414 = smul.u32 %s412, 64
                  %s415 = scalar_lea.vmem %s304, %s413 [#allocation2]
                  %s416 = scalar_lea.vmem %s315, %s414
                $region67: #{tpu_custom_call.1} parent=61 // loop_footer
                  %s388 = sadd.s32 %s386, 1
                $region68: #{tpu_custom_call.1} parent=61 // loop_footer_branch
                  %385 = sbr.rel target = $region64
                $region69: #{tpu_custom_call.1} parent=61 // loop_exit
                  _
                %s417 = sshrl.u32 %s311, 3
                %s418 = sand.u32 %s311, 7
                %s419 = smul.u32 %s417, 8
                %s420 = smul.u32 8, %s419
                %s421 = scalar_lea.vmem %s304, %s420 [#allocation2]
                %s422 = smul.u32 8, %s419
                %s423 = scalar_lea.vmem %s315, %s422
                // While loop
                $region70: #{tpu_custom_call.1} parent=61 // loop_pre_header
                  _
                $region71: #{tpu_custom_call.1} parent=61 // loop_header
                  %s425 = sphi 0, %s427
                  %p426 = scmp.ge.s32.totalorder %s425, %s418
                  %s430 = sphi 0, %s437
                  %s431 = sphi %s421, %s440
                  %s432 = sphi %s423, %s441
                $region72: #{tpu_custom_call.1} parent=61 // loop_header_branch
                  %429 = sbr.rel (%p426) target = $region76
                $region73: #{tpu_custom_call.1} parent=61 // loop_body
                  %v433 = vld [vmem:[%s431] sm:$0xff]
                  %434 = vst [vmem:[%s432] sm:$0xff] %v433
                  %s435 = sadd.s32 1, %s430
                  %p436 = scmp.ge.s32.totalorder %s435, %s418
                  %s437 = scalar_select %p436, 0, %s435
                  %s438 = smul.u32 %s437, 8
                  %s439 = smul.u32 %s437, 8
                  %s440 = scalar_lea.vmem %s421, %s438 [#allocation2]
                  %s441 = scalar_lea.vmem %s423, %s439
                $region74: #{tpu_custom_call.1} parent=61 // loop_footer
                  %s427 = sadd.s32 %s425, 1
                $region75: #{tpu_custom_call.1} parent=61 // loop_footer_branch
                  %424 = sbr.rel target = $region71
                $region76: #{tpu_custom_call.1} parent=61 // loop_exit
                  _
              $region62: #{tpu_custom_call.1} parent=39 // pred_fallthru
                _
              // Predicated region
              $region77: #{tpu_custom_call.1} parent=39 // pred_check
                _
              $region78: #{tpu_custom_call.1} parent=39 // pred_check_branch
                %443 = sbr.rel target = $region80
              $region79: #{tpu_custom_call.1} parent=39 // pred_region
                _
              $region80: #{tpu_custom_call.1} parent=39 // pred_fallthru
                _
            $region40: #{tpu_custom_call.1} parent=35 // pred_fallthru
              _
            // Predicated region
            $region41: #{tpu_custom_call.1} parent=35 // pred_check
              _
            $region42: #{tpu_custom_call.1} parent=35 // pred_check_branch
              %322 = sbr.rel target = $region44
            $region43: #{tpu_custom_call.1} parent=35 // pred_region
              %s324 = sshrl.u32 %s311, 3
              // While loop
              $region45: #{tpu_custom_call.1} parent=43 // loop_pre_header
                _
              $region46: #{tpu_custom_call.1} parent=43 // loop_header
                %s326 = sphi 0, %s328
                %p327 = scmp.ge.s32.totalorder %s326, %s324
                %s331 = sphi 0, %s352
                %s332 = sphi %s304, %s355
                %s333 = sphi %s315, %s356
              $region47: #{tpu_custom_call.1} parent=43 // loop_header_branch
                %330 = sbr.rel (%p327) target = $region51
              $region48: #{tpu_custom_call.1} parent=43 // loop_body
                %v334 = vld [vmem:[%s332] sm:$0xff]
                %335 = vst [vmem:[%s333] sm:$0xff] %v334
                %v336 = vld [vmem:[%s332 + $0x8] sm:$0xff]
                %337 = vst [vmem:[%s333 + $0x8] sm:$0xff] %v336
                %v338 = vld [vmem:[%s332 + $0x10] sm:$0xff]
                %339 = vst [vmem:[%s333 + $0x10] sm:$0xff] %v338
                %v340 = vld [vmem:[%s332 + $0x18] sm:$0xff]
                %341 = vst [vmem:[%s333 + $0x18] sm:$0xff] %v340
                %v342 = vld [vmem:[%s332 + $0x20] sm:$0xff]
                %343 = vst [vmem:[%s333 + $0x20] sm:$0xff] %v342
                %v344 = vld [vmem:[%s332 + $0x28] sm:$0xff]
                %345 = vst [vmem:[%s333 + $0x28] sm:$0xff] %v344
                %v346 = vld [vmem:[%s332 + $0x30] sm:$0xff]
                %347 = vst [vmem:[%s333 + $0x30] sm:$0xff] %v346
                %v348 = vld [vmem:[%s332 + $0x38] sm:$0xff]
                %349 = vst [vmem:[%s333 + $0x38] sm:$0xff] %v348
                %s350 = sadd.s32 1, %s331
                %p351 = scmp.ge.s32.totalorder %s350, %s324
                %s352 = scalar_select %p351, 0, %s350
                %s353 = smul.u32 %s352, 64
                %s354 = smul.u32 %s352, 64
                %s355 = scalar_lea.vmem %s304, %s353 [#allocation2]
                %s356 = scalar_lea.vmem %s315, %s354
              $region49: #{tpu_custom_call.1} parent=43 // loop_footer
                %s328 = sadd.s32 %s326, 1
              $region50: #{tpu_custom_call.1} parent=43 // loop_footer_branch
                %325 = sbr.rel target = $region46
              $region51: #{tpu_custom_call.1} parent=43 // loop_exit
                _
              %s357 = sshrl.u32 %s311, 3
              %s358 = sand.u32 %s311, 7
              %s359 = smul.u32 %s357, 8
              %s360 = smul.u32 8, %s359
              %s361 = scalar_lea.vmem %s304, %s360 [#allocation2]
              %s362 = smul.u32 8, %s359
              %s363 = scalar_lea.vmem %s315, %s362
              // While loop
              $region52: #{tpu_custom_call.1} parent=43 // loop_pre_header
                _
              $region53: #{tpu_custom_call.1} parent=43 // loop_header
                %s365 = sphi 0, %s367
                %p366 = scmp.ge.s32.totalorder %s365, %s358
                %s370 = sphi 0, %s377
                %s371 = sphi %s361, %s380
                %s372 = sphi %s363, %s381
              $region54: #{tpu_custom_call.1} parent=43 // loop_header_branch
                %369 = sbr.rel (%p366) target = $region58
              $region55: #{tpu_custom_call.1} parent=43 // loop_body
                %v373 = vld [vmem:[%s371] sm:$0xff]
                %374 = vst [vmem:[%s372] sm:$0xff] %v373
                %s375 = sadd.s32 1, %s370
                %p376 = scmp.ge.s32.totalorder %s375, %s358
                %s377 = scalar_select %p376, 0, %s375
                %s378 = smul.u32 %s377, 8
                %s379 = smul.u32 %s377, 8
                %s380 = scalar_lea.vmem %s361, %s378 [#allocation2]
                %s381 = scalar_lea.vmem %s363, %s379
              $region56: #{tpu_custom_call.1} parent=43 // loop_footer
                %s367 = sadd.s32 %s365, 1
              $region57: #{tpu_custom_call.1} parent=43 // loop_footer_branch
                %364 = sbr.rel target = $region53
              $region58: #{tpu_custom_call.1} parent=43 // loop_exit
                _
            $region44: #{tpu_custom_call.1} parent=35 // pred_fallthru
              _
          $region36: #{tpu_custom_call.1} parent=31 // pred_fallthru
            _
          %444 = vnop
        $region32: #{tpu_custom_call.1} parent=27 // pred_fallthru
          _
      $region28: #{tpu_custom_call.1} parent=5 // pred_fallthru
        _
      %p445 = scmp.le.s32.totalorder 2, %s8
      // Predicated region
      $region81: #{tpu_custom_call.1} parent=5 // pred_check
        %p446 = pneg %p445
      $region82: #{tpu_custom_call.1} parent=5 // pred_check_branch
        %448 = sbr.rel (%p446) target = $region84
      $region83: #{tpu_custom_call.1} parent=5 // pred_region
        %s449 = ssub.s32 %s8, 2
        // Predicated region
        $region85: #{tpu_custom_call.1} parent=83 // pred_check
          %p450 = pneg %p84
        $region86: #{tpu_custom_call.1} parent=83 // pred_check_branch
          %452 = sbr.rel (%p450) target = $region88
        $region87: #{tpu_custom_call.1} parent=83 // pred_region
          %s453 = sand.u32 %s69, 1
          %s454 = sand.u32 %s69, 1
          %s455 = smul.addr %s454, 64
          %s456 = scalar_lea.vmem [#allocation2], %s455
        $region88: #{tpu_custom_call.1} parent=83 // pred_fallthru
          _
      $region84: #{tpu_custom_call.1} parent=5 // pred_fallthru
        _
    $region6: #{tpu_custom_call.1} parent=1 // loop_footer
      %s12 = sadd.s32 1, %s8
    $region7: #{tpu_custom_call.1} parent=1 // loop_footer_branch
      %7 = sbr.rel target = $region3
    $region8: #{tpu_custom_call.1} parent=1 // loop_exit
      _

</llo_original>
